<compile_context>
chip_gen: v7x
topology: tpu7x:2x2x1
jax: 0.10.0
libtpu: 0.0.40
codegen_flags: <defaults>
</compile_context>

<pallas_src>
import math
import jax
import jax.numpy as jnp
from jax import lax
from jax.experimental import pallas as pl
from jax.experimental.pallas import tpu as pltpu


def _round_up(a, b):
    return (a + b - 1) // b * b


def _ff_kernel(x_ref, w1a_ref, w1g_ref, g_ref, w2_ref, o_ref):
    # x_ref: (tm, Dp)  w1a_ref/w1g_ref: (Dp, inner)  g_ref: (1, inner)
    # w2_ref: (inner, Dp)  o_ref: (tm, Dp)
    x = x_ref[...]

    # --- Linear(dim -> 2*inner, bias=False), split into value / gate dots ---
    # Native-dtype operands straight to the MXU; fp32 accumulation.
    a = jnp.dot(x, w1a_ref[...], preferred_element_type=jnp.float32)
    gate = jnp.dot(x, w1g_ref[...], preferred_element_type=jnp.float32)

    # --- GEGLU: value * gelu(gate), exact (erf) gelu like torch F.gelu ---
    inv_sqrt2 = jnp.float32(0.7071067811865476)
    y = a * (jnp.float32(0.5) * gate * (jnp.float32(1.0) + lax.erf(gate * inv_sqrt2)))

    # --- LayerNorm(inner): gain-only, biased variance, eps=1e-5 (fp32 math) ---
    # Single-pass sum / sum-of-squares formulation (one XLU reduction fewer).
    inner = y.shape[-1]
    inv_n = jnp.float32(1.0 / inner)
    s = jnp.sum(y, axis=-1, keepdims=True)
    sq = jnp.sum(y * y, axis=-1, keepdims=True)
    mean = s * inv_n
    var = sq * inv_n - mean * mean
    y_norm = (y - mean) * lax.rsqrt(var + jnp.float32(1e-5)) \
        * g_ref[...].astype(jnp.float32)

    # Dropout(p=0.0) is the identity in this forward pass.

    # --- Linear(inner -> dim, bias=False) ---
    out = jnp.dot(y_norm.astype(w2_ref.dtype), w2_ref[...],
                  preferred_element_type=jnp.float32)
    o_ref[...] = out.astype(o_ref.dtype)


def feed_forward_pallas(x, w1, g, w2, *, tm=256):
    """x: [B, N, dim]; w1: [dim, 2*inner]; g: [inner]; w2: [inner, dim].

    Weights are pre-transposed vs. PyTorch nn.Linear (row-major matmuls).
    """
    B, N, D = x.shape
    M = B * N
    inner2 = w1.shape[1]
    inner = inner2 // 2
    assert w1.shape[0] == D and w2.shape == (inner, D) and g.shape == (inner,)

    # Split fused GEGLU projection into value / gate halves (no in-kernel
    # lane-axis slicing; halves the live intermediate width).
    w1a = w1[:, :inner]
    w1g = w1[:, inner:]

    # Pad the feature dim to a lane-dense multiple of 128. Zero rows of w1a/w1g
    # and zero cols of w2 make the padding exact (no effect on the math).
    Dp = max(128, _round_up(D, 128))
    if Dp != D:
        x = jnp.pad(x, ((0, 0), (0, 0), (0, Dp - D)))
        w1a = jnp.pad(w1a, ((0, Dp - D), (0, 0)))
        w1g = jnp.pad(w1g, ((0, Dp - D), (0, 0)))
        w2p = jnp.pad(w2, ((0, 0), (0, Dp - D)))
    else:
        w2p = w2

    # Token-axis tile: cap at (padded) M, keep a multiple of 8 sublanes, and pad
    # M up to a tile multiple so the grid iterates and pipelines the streams.
    tm = int(max(8, _round_up(min(tm, _round_up(M, 8)), 8)))
    Mp = _round_up(M, tm)
    x2 = x.reshape(M, Dp)
    if Mp != M:
        x2 = jnp.pad(x2, ((0, Mp - M), (0, 0)))  # zero rows -> zero outputs, no NaNs
    g2 = g.reshape(1, inner)

    # VMEM budget: resident weights (assume double-buffered by the pipeline),
    # double-buffered x/out tiles, fp32 intermediates, plus headroom.
    wbytes = 2 * ((w1a.size + w1g.size + w2p.size) * w1a.dtype.itemsize
                  + g2.size * g2.dtype.itemsize)
    abytes = 2 * 2 * tm * Dp * x2.dtype.itemsize      # x + out, double-buffered
    ibytes = 6 * tm * inner * 4                       # fp32 intermediates headroom
    vmem_limit = int(max(32 << 20,
                         min(int(1.5 * (wbytes + abytes + ibytes)) + (4 << 20),
                             100 << 20)))

    out2 = pl.pallas_call(
        _ff_kernel,
        out_shape=jax.ShapeDtypeStruct((Mp, Dp), x2.dtype),
        grid_spec=pltpu.PrefetchScalarGridSpec(
            num_scalar_prefetch=0,
            grid=(Mp // tm,),
            in_specs=[
                pl.BlockSpec((tm, Dp), lambda i: (i, 0)),        # x tile (streamed)
                pl.BlockSpec((Dp, inner), lambda i: (0, 0)),     # w1 value half (resident)
                pl.BlockSpec((Dp, inner), lambda i: (0, 0)),     # w1 gate half  (resident)
                pl.BlockSpec((1, inner), lambda i: (0, 0)),      # layernorm gain
                pl.BlockSpec((inner, Dp), lambda i: (0, 0)),     # w2 (resident)
            ],
            out_specs=pl.BlockSpec((tm, Dp), lambda i: (i, 0)),
        ),
        compiler_params=pltpu.CompilerParams(
            dimension_semantics=("parallel",),
            vmem_limit_bytes=vmem_limit),
    )(x2, w1a, w1g, g2, w2p)

    return out2[:M, :D].reshape(B, N, D)


def feed_forward_ref(x, w1, g, w2):
    """Pure-JAX reference mirroring the PyTorch module."""
    h = x @ w1
    inner = h.shape[-1] // 2
    a, gate = h[..., :inner], h[..., inner:]
    y = a * (0.5 * gate * (1.0 + lax.erf(gate / jnp.sqrt(2.0))))
    mean = jnp.mean(y, axis=-1, keepdims=True)
    var = jnp.mean((y - mean) ** 2, axis=-1, keepdims=True)
    y = (y - mean) * lax.rsqrt(var + 1e-5) * g
    return y @ w2


if __name__ == "__main__":
    # Small shapes consistent with FeedForward(dim=32, mult=4): inner_dim = 128.
    B, N, dim, mult = 2, 8, 32, 4
    inner = dim * mult

    key = jax.random.PRNGKey(0)
    kx, k1, k2 = jax.random.split(key, 3)

    x = jax.random.normal(kx, (B, N, dim), dtype=jnp.float32)
    # Deterministic nn.Linear-style uniform init, pre-transposed layouts.
    bound1 = 1.0 / math.sqrt(dim)
    w1 = jax.random.uniform(k1, (dim, inner * 2), jnp.float32, -bound1, bound1)
    bound2 = 1.0 / math.sqrt(inner)
    w2 = jax.random.uniform(k2, (inner, dim), jnp.float32, -bound2, bound2)
    g = jnp.ones((inner,), dtype=jnp.float32)  # LayerNorm gain init = ones

    out = feed_forward_pallas(x, w1, g, w2)
    out = jax.block_until_ready(out)

    ref = feed_forward_ref(x, w1, g, w2)
    assert out.shape == (B, N, dim)
    assert jnp.allclose(out, ref, atol=1e-4, rtol=1e-4), "mismatch vs reference"

    print("KERNEL_OK")
</pallas_src>

<mosaic_0001>
module attributes {stable_mosaic.version = 11 : i64} {
  func.func @_ff_kernel(%arg0: i32, %arg1: memref<16x128xf32, #tpu.memory_space<vmem>>, %arg2: memref<128x128xf32, #tpu.memory_space<vmem>>, %arg3: memref<128x128xf32, #tpu.memory_space<vmem>>, %arg4: memref<1x128xf32, #tpu.memory_space<vmem>>, %arg5: memref<128x128xf32, #tpu.memory_space<vmem>>, %arg6: memref<16x128xf32, #tpu.memory_space<vmem>>) attributes {dimension_semantics = [#tpu.dimension_semantics<parallel>], iteration_bounds = array<i64: 1>, scalar_prefetch = 0 : i64, scratch_operands = 0 : i64, tpu.core_type = #tpu.core_type<tc>, window_params = [{transform_indices = @transform_0, window_bounds = array<i64: 16, 128>}, {pipeline_mode = #tpu.pipeline_mode<synchronous>, transform_indices = @transform_1, window_bounds = array<i64: 128, 128>}, {pipeline_mode = #tpu.pipeline_mode<synchronous>, transform_indices = @transform_2, window_bounds = array<i64: 128, 128>}, {pipeline_mode = #tpu.pipeline_mode<synchronous>, transform_indices = @transform_3, window_bounds = array<i64: 1, 128>}, {pipeline_mode = #tpu.pipeline_mode<synchronous>, transform_indices = @transform_4, window_bounds = array<i64: 128, 128>}, {transform_indices = @transform_5, window_bounds = array<i64: 16, 128>}]} {
    %c0 = arith.constant 0 : index
    %c0_0 = arith.constant 0 : index
    %0 = vector.load %arg1[%c0, %c0_0] : memref<16x128xf32, #tpu.memory_space<vmem>>, vector<16x128xf32>
    %c0_1 = arith.constant 0 : index
    %c0_2 = arith.constant 0 : index
    %1 = vector.load %arg2[%c0_1, %c0_2] : memref<128x128xf32, #tpu.memory_space<vmem>>, vector<128x128xf32>
    %cst = arith.constant dense<0.000000e+00> : vector<16x128xf32>
    %2 = tpu.matmul %0, %1, %cst {dimension_numbers = #tpu.dot_dimension_numbers<[1], [0], [0], [1], [0, 0, 1, 1], [], []>} : vector<16x128xf32>, vector<128x128xf32>, vector<16x128xf32> -> vector<16x128xf32>
    %c0_3 = arith.constant 0 : index
    %c0_4 = arith.constant 0 : index
    %3 = vector.load %arg3[%c0_3, %c0_4] : memref<128x128xf32, #tpu.memory_space<vmem>>, vector<128x128xf32>
    %cst_5 = arith.constant dense<0.000000e+00> : vector<16x128xf32>
    %4 = tpu.matmul %0, %3, %cst_5 {dimension_numbers = #tpu.dot_dimension_numbers<[1], [0], [0], [1], [0, 0, 1, 1], [], []>} : vector<16x128xf32>, vector<128x128xf32>, vector<16x128xf32> -> vector<16x128xf32>
    %cst_6 = arith.constant 5.000000e-01 : f32
    %5 = vector.broadcast %cst_6 : f32 to vector<16x128xf32>
    %6 = arith.mulf %5, %4 : vector<16x128xf32>
    %cst_7 = arith.constant 0.707106769 : f32
    %7 = vector.broadcast %cst_7 : f32 to vector<16x128xf32>
    %8 = arith.mulf %4, %7 : vector<16x128xf32>
    %9 = math.erf %8 : vector<16x128xf32>
    %cst_8 = arith.constant 1.000000e+00 : f32
    %10 = vector.broadcast %cst_8 : f32 to vector<16x128xf32>
    %11 = arith.addf %10, %9 : vector<16x128xf32>
    %12 = arith.mulf %6, %11 : vector<16x128xf32>
    %13 = arith.mulf %2, %12 : vector<16x128xf32>
    %cst_9 = arith.constant dense<0.000000e+00> : vector<16xf32>
    %14 = vector.multi_reduction <add>, %13, %cst_9 [1] : vector<16x128xf32> to vector<16xf32>
    %15 = vector.shape_cast %14 : vector<16xf32> to vector<16x1xf32>
    %16 = arith.mulf %13, %13 : vector<16x128xf32>
    %cst_10 = arith.constant dense<0.000000e+00> : vector<16xf32>
    %17 = vector.multi_reduction <add>, %16, %cst_10 [1] : vector<16x128xf32> to vector<16xf32>
    %18 = vector.shape_cast %17 : vector<16xf32> to vector<16x1xf32>
    %cst_11 = arith.constant 7.812500e-03 : f32
    %19 = vector.broadcast %cst_11 : f32 to vector<16x1xf32>
    %20 = arith.mulf %15, %19 : vector<16x1xf32>
    %cst_12 = arith.constant 7.812500e-03 : f32
    %21 = vector.broadcast %cst_12 : f32 to vector<16x1xf32>
    %22 = arith.mulf %18, %21 : vector<16x1xf32>
    %23 = arith.mulf %20, %20 : vector<16x1xf32>
    %24 = arith.subf %22, %23 : vector<16x1xf32>
    %25 = vector.broadcast %20 : vector<16x1xf32> to vector<16x128xf32>
    %26 = arith.subf %13, %25 : vector<16x128xf32>
    %cst_13 = arith.constant 9.99999974E-6 : f32
    %27 = vector.broadcast %cst_13 : f32 to vector<16x1xf32>
    %28 = arith.addf %24, %27 : vector<16x1xf32>
    %29 = math.rsqrt %28 : vector<16x1xf32>
    %30 = vector.broadcast %29 : vector<16x1xf32> to vector<16x128xf32>
    %31 = arith.mulf %26, %30 : vector<16x128xf32>
    %c0_14 = arith.constant 0 : index
    %c0_15 = arith.constant 0 : index
    %32 = vector.load %arg4[%c0_14, %c0_15] : memref<1x128xf32, #tpu.memory_space<vmem>>, vector<1x128xf32>
    %33 = vector.broadcast %32 : vector<1x128xf32> to vector<16x128xf32>
    %34 = arith.mulf %31, %33 : vector<16x128xf32>
    %c0_16 = arith.constant 0 : index
    %c0_17 = arith.constant 0 : index
    %35 = vector.load %arg5[%c0_16, %c0_17] : memref<128x128xf32, #tpu.memory_space<vmem>>, vector<128x128xf32>
    %cst_18 = arith.constant dense<0.000000e+00> : vector<16x128xf32>
    %36 = tpu.matmul %34, %35, %cst_18 {dimension_numbers = #tpu.dot_dimension_numbers<[1], [0], [0], [1], [0, 0, 1, 1], [], []>} : vector<16x128xf32>, vector<128x128xf32>, vector<16x128xf32> -> vector<16x128xf32>
    %c0_19 = arith.constant 0 : index
    %c0_20 = arith.constant 0 : index
    %37 = vector.load %arg6[%c0_19, %c0_20] : memref<16x128xf32, #tpu.memory_space<vmem>>, vector<16x128xf32>
    tpu.vector_store %arg6[%c0_19, %c0_20], %36 {strides = array<i32>} : memref<16x128xf32, #tpu.memory_space<vmem>>, vector<16x128xf32>,
    return
  }
  func.func @transform_0(%arg0: i32) -> (i32, i32) {
    %c0_i32 = arith.constant 0 : i32
    %c0_i32_0 = arith.constant 0 : i32
    return %arg0, %c0_i32 : i32, i32
  }
  func.func @transform_1(%arg0: i32) -> (i32, i32) {
    %c0_i32 = arith.constant 0 : i32
    %c0_i32_0 = arith.constant 0 : i32
    %c0_i32_1 = arith.constant 0 : i32
    return %c0_i32, %c0_i32_0 : i32, i32
  }
  func.func @transform_2(%arg0: i32) -> (i32, i32) {
    %c0_i32 = arith.constant 0 : i32
    %c0_i32_0 = arith.constant 0 : i32
    %c0_i32_1 = arith.constant 0 : i32
    return %c0_i32, %c0_i32_0 : i32, i32
  }
  func.func @transform_3(%arg0: i32) -> (i32, i32) {
    %c0_i32 = arith.constant 0 : i32
    %c0_i32_0 = arith.constant 0 : i32
    %c0_i32_1 = arith.constant 0 : i32
    return %c0_i32, %c0_i32_0 : i32, i32
  }
  func.func @transform_4(%arg0: i32) -> (i32, i32) {
    %c0_i32 = arith.constant 0 : i32
    %c0_i32_0 = arith.constant 0 : i32
    %c0_i32_1 = arith.constant 0 : i32
    return %c0_i32, %c0_i32_0 : i32, i32
  }
  func.func @transform_5(%arg0: i32) -> (i32, i32) {
    %c0_i32 = arith.constant 0 : i32
    %c0_i32_0 = arith.constant 0 : i32
    return %arg0, %c0_i32 : i32, i32
  }
}

</mosaic_0001>

<llo_original>
// kernel: tpu_custom_call.1
$region0: #{tpu_custom_call.1}
  #allocation0 [shape = 'u32[]', space=smem, size = 0x4, offset = 0x4, fixed_abs, tag = 'smem constant byte address 0x4 - core index']
  #allocation1 [shape = 'u32[144,128]{1,0:T(1,128)}', space=vmem, size = 0x12000, scoped, tag = 'internal scratch']
  %s0 = inlined_call_operand.hbm [shape: f32[16,128], index: 0, kind: input, shape index: {}]
  %s1 = inlined_call_operand.hbm [shape: f32[128,128], index: 1, kind: input, shape index: {}]
  %s2 = inlined_call_operand.hbm [shape: f32[128,128], index: 2, kind: input, shape index: {}]
  %s3 = inlined_call_operand.vmem [shape: f32[1,128], index: 3, kind: input, shape index: {}]
  %s4 = inlined_call_operand.hbm [shape: f32[128,128], index: 4, kind: input, shape index: {}]
  %s5 = inlined_call_operand.hbm [shape: f32[16,128], index: 5, kind: output, shape index: {}]
  %s6 = sld [smem:[#allocation0]]
  $region46: #{tpu_custom_call.1} parent=0
    _
  %s8 = ssub.s32 1, %s6
  %s9 = scalar_select 0, %s8, %s6
  $region1: #{tpu_custom_call.1} parent=0
    #allocation2 [shape = 'u8[8192]{0}', space=vmem, size = 0x2000, scoped, tag = 'input window, operand 0, single buffered']
    #allocation3 [shape = 's32[1]{0}', space=sflag, size = 0x4, scoped, tag = 'scoped memory for tpu_custom_call.1']
    #allocation4 [shape = 's32[1]{0}', space=sflag, size = 0x4, scoped, tag = 'scoped memory for tpu_custom_call.1']
    #allocation5 [shape = 'u8[65536]{0}', space=vmem, size = 0x10000, scoped, tag = 'input window, operand 1, single buffered']
    #allocation6 [shape = 's32[1]{0}', space=sflag, size = 0x4, scoped, tag = 'scoped memory for tpu_custom_call.1']
    #allocation7 [shape = 'u8[65536]{0}', space=vmem, size = 0x10000, scoped, tag = 'input window, operand 2, single buffered']
    #allocation8 [shape = 'u8[65536]{0}', space=vmem, size = 0x10000, scoped, tag = 'input window, operand 4, single buffered']
    #allocation9 [shape = 's32[1]{0}', space=sflag, size = 0x4, scoped, tag = 'scoped memory for tpu_custom_call.1']
    #allocation10 [shape = 'u8[8192]{0}', space=vmem, size = 0x2000, scoped, tag = 'output window, operand 0, single buffered']
    %10 = vsyncpa [#allocation3], 0
    %11 = vsyncpa [#allocation6], 0
    %12 = vsyncpa [#allocation9], 0
    %13 = vsyncpa [#allocation4], 0
    // Predicated region
    $region2: #{tpu_custom_call.1} parent=1 // pred_check
      _
    $region3: #{tpu_custom_call.1} parent=1 // pred_check_branch
      %15 = sbr.rel (0) target = $region5
    $region4: #{tpu_custom_call.1} parent=1 // pred_region
      %s17 = ssub.s32 256, 256
      %18 = vsyncadd [#allocation3], %s17
      %s19 = sshll.u32 [#allocation2], 4
      %s20 = int_to_ptr.vmem [resolvable:$true] %s19
      %25 = dma.hbm_to_vmem [thread:$0]  %s0, 256, %s20, [#allocation3], 128, 128, 8
    $region5: #{tpu_custom_call.1} parent=1 // pred_fallthru
      _
    // Predicated region
    $region6: #{tpu_custom_call.1} parent=1 // pred_check
      _
    $region7: #{tpu_custom_call.1} parent=1 // pred_check_branch
      %27 = sbr.rel (0) target = $region9
    $region8: #{tpu_custom_call.1} parent=1 // pred_region
      %s29 = ssub.s32 2048, 2048
      %30 = vsyncadd [#allocation6], %s29
      %s31 = sshll.u32 [#allocation5], 4
      %s32 = int_to_ptr.vmem [resolvable:$true] %s31
      %37 = dma.hbm_to_vmem [thread:$0]  %s1, 2048, %s32, [#allocation6], 128, 128, 8
    $region9: #{tpu_custom_call.1} parent=1 // pred_fallthru
      _
    // Predicated region
    $region10: #{tpu_custom_call.1} parent=1 // pred_check
      _
    $region11: #{tpu_custom_call.1} parent=1 // pred_check_branch
      %39 = sbr.rel (0) target = $region13
    $region12: #{tpu_custom_call.1} parent=1 // pred_region
      %s41 = ssub.s32 2048, 2048
      %42 = vsyncadd [#allocation6], %s41
      %s43 = sshll.u32 [#allocation7], 4
      %s44 = int_to_ptr.vmem [resolvable:$true] %s43
      %49 = dma.hbm_to_vmem [thread:$0]  %s2, 2048, %s44, [#allocation6], 128, 128, 8
    $region13: #{tpu_custom_call.1} parent=1 // pred_fallthru
      _
    // Predicated region
    $region14: #{tpu_custom_call.1} parent=1 // pred_check
      _
    $region15: #{tpu_custom_call.1} parent=1 // pred_check_branch
      %51 = sbr.rel (0) target = $region17
    $region16: #{tpu_custom_call.1} parent=1 // pred_region
      _
    $region17: #{tpu_custom_call.1} parent=1 // pred_fallthru
      _
    // Predicated region
    $region18: #{tpu_custom_call.1} parent=1 // pred_check
      _
    $region19: #{tpu_custom_call.1} parent=1 // pred_check_branch
      %53 = sbr.rel (0) target = $region21
    $region20: #{tpu_custom_call.1} parent=1 // pred_region
      %s55 = ssub.s32 2048, 2048
      %56 = vsyncadd [#allocation9], %s55
      %s57 = sshll.u32 [#allocation8], 4
      %s58 = int_to_ptr.vmem [resolvable:$true] %s57
      %63 = dma.hbm_to_vmem [thread:$0]  %s4, 2048, %s58, [#allocation9], 128, 128, 8
    $region21: #{tpu_custom_call.1} parent=1 // pred_fallthru
      _
    // Predicated region
    $region22: #{tpu_custom_call.1} parent=1 // pred_check
      _
    $region23: #{tpu_custom_call.1} parent=1 // pred_check_branch
      %65 = sbr.rel (0) target = $region25
    $region24: #{tpu_custom_call.1} parent=1 // pred_region
      %66 = dma.done [#allocation3], 256
    $region25: #{tpu_custom_call.1} parent=1 // pred_fallthru
      _
    // Predicated region
    $region26: #{tpu_custom_call.1} parent=1 // pred_check
      _
    $region27: #{tpu_custom_call.1} parent=1 // pred_check_branch
      %68 = sbr.rel (0) target = $region29
    $region28: #{tpu_custom_call.1} parent=1 // pred_region
      %69 = dma.done [#allocation6], 2048
    $region29: #{tpu_custom_call.1} parent=1 // pred_fallthru
      _
    // Predicated region
    $region30: #{tpu_custom_call.1} parent=1 // pred_check
      _
    $region31: #{tpu_custom_call.1} parent=1 // pred_check_branch
      %71 = sbr.rel (0) target = $region33
    $region32: #{tpu_custom_call.1} parent=1 // pred_region
      %72 = dma.done [#allocation6], 2048
    $region33: #{tpu_custom_call.1} parent=1 // pred_fallthru
      _
    // Predicated region
    $region34: #{tpu_custom_call.1} parent=1 // pred_check
      _
    $region35: #{tpu_custom_call.1} parent=1 // pred_check_branch
      %74 = sbr.rel (0) target = $region37
    $region36: #{tpu_custom_call.1} parent=1 // pred_region
      %75 = dma.done [#allocation9], 2048
    $region37: #{tpu_custom_call.1} parent=1 // pred_fallthru
      _
    %v76 = vld [vmem:[#allocation2] sm:$0xff]
    %v77 = vld [vmem:[#allocation2 + $0x8] sm:$0xff]
    %v78 = vld [vmem:[#allocation5] sm:$0xff]
    %v79 = vld [vmem:[#allocation5 + $0x8] sm:$0xff]
    %v80 = vld [vmem:[#allocation5 + $0x10] sm:$0xff]
    %v81 = vld [vmem:[#allocation5 + $0x18] sm:$0xff]
    %v82 = vld [vmem:[#allocation5 + $0x20] sm:$0xff]
    %v83 = vld [vmem:[#allocation5 + $0x28] sm:$0xff]
    %v84 = vld [vmem:[#allocation5 + $0x30] sm:$0xff]
    %v85 = vld [vmem:[#allocation5 + $0x38] sm:$0xff]
    %v86 = vld [vmem:[#allocation5 + $0x40] sm:$0xff]
    %v87 = vld [vmem:[#allocation5 + $0x48] sm:$0xff]
    %v88 = vld [vmem:[#allocation5 + $0x50] sm:$0xff]
    %v89 = vld [vmem:[#allocation5 + $0x58] sm:$0xff]
    %v90 = vld [vmem:[#allocation5 + $0x60] sm:$0xff]
    %v91 = vld [vmem:[#allocation5 + $0x68] sm:$0xff]
    %v92 = vld [vmem:[#allocation5 + $0x70] sm:$0xff]
    %v93 = vld [vmem:[#allocation5 + $0x78] sm:$0xff]
    %94 = vmatprep.subr.mxu0 0.0
    %95 = vmatpush1.msra.mxu0 %v78
    %96 = vmatprep.subr.mxu0 0.0
    %97 = vmatpush1.msra.mxu0 %v79
    %98 = vmatprep.subr.mxu0 0.0
    %99 = vmatpush1.msra.mxu0 %v80
    %100 = vmatprep.subr.mxu0 0.0
    %101 = vmatpush1.msra.mxu0 %v81
    %102 = vmatprep.subr.mxu0 0.0
    %103 = vmatpush1.msra.mxu0 %v82
    %104 = vmatprep.subr.mxu0 0.0
    %105 = vmatpush1.msra.mxu0 %v83
    %106 = vmatprep.subr.mxu0 0.0
    %107 = vmatpush1.msra.mxu0 %v84
    %108 = vmatprep.subr.mxu0 0.0
    %109 = vmatpush1.msra.mxu0 %v85
    %110 = vmatprep.subr.mxu0 0.0
    %111 = vmatpush1.msra.mxu0 %v86
    %112 = vmatprep.subr.mxu0 0.0
    %113 = vmatpush1.msra.mxu0 %v87
    %114 = vmatprep.subr.mxu0 0.0
    %115 = vmatpush1.msra.mxu0 %v88
    %116 = vmatprep.subr.mxu0 0.0
    %117 = vmatpush1.msra.mxu0 %v89
    %118 = vmatprep.subr.mxu0 0.0
    %119 = vmatpush1.msra.mxu0 %v90
    %120 = vmatprep.subr.mxu0 0.0
    %121 = vmatpush1.msra.mxu0 %v91
    %122 = vmatprep.subr.mxu0 0.0
    %123 = vmatpush1.msra.mxu0 %v92
    %124 = vmatprep.subr.mxu0 0.0
    %125 = vmatpush1.msra.mxu0 %v93
    %126 = vmatprep.subr.mxu0 0.0
    %127 = vmatpush1.msra.mxu0 0.0
    %128 = vmatprep.subr.mxu0 0.0
    %129 = vmatpush1.msra.mxu0 0.0
    %130 = vmatprep.subr.mxu0 0.0
    %131 = vmatpush1.msra.mxu0 0.0
    %132 = vmatprep.subr.mxu0 0.0
    %133 = vmatpush1.msra.mxu0 0.0
    %134 = vmatprep.subr.mxu0 0.0
    %135 = vmatpush1.msra.mxu0 0.0
    %136 = vmatprep.subr.mxu0 0.0
    %137 = vmatpush1.msra.mxu0 0.0
    %138 = vmatprep.subr.mxu0 0.0
    %139 = vmatpush1.msra.mxu0 0.0
    %140 = vmatprep.subr.mxu0 0.0
    %141 = vmatpush1.msra.mxu0 0.0
    %142 = vmatprep.subr.mxu0 0.0
    %143 = vmatpush1.msra.mxu0 0.0
    %144 = vmatprep.subr.mxu0 0.0
    %145 = vmatpush1.msra.mxu0 0.0
    %146 = vmatprep.subr.mxu0 0.0
    %147 = vmatpush1.msra.mxu0 0.0
    %148 = vmatprep.subr.mxu0 0.0
    %149 = vmatpush1.msra.mxu0 0.0
    %150 = vmatprep.subr.mxu0 0.0
    %151 = vmatpush1.msra.mxu0 0.0
    %152 = vmatprep.subr.mxu0 0.0
    %153 = vmatpush1.msra.mxu0 0.0
    %154 = vmatprep.subr.mxu0 0.0
    %155 = vmatpush1.msra.mxu0 0.0
    %156 = vmatprep.subr.mxu0 0.0
    %157 = vmatpush1.msra.mxu0 0.0
    %158 = vmatprep.mubr.f32.mxu0 0.0
    %159 = vmatmul.mubr.f32.gmra.mrb[0].mxu0 %v76
    %v160 = vpop.f32.mrb[0].mxu0
    %v161 = vadd.f32 0.0, %v160
    %v162 = vpop.f32.mrb[0].mxu0
    %163 = vmatprep.mubr.f32.mxu0 0.0
    %164 = vmatmul.mubr.f32.gmra.mrb[0].mxu0 %v77
    %v165 = vpop.f32.mrb[0].mxu0
    %v166 = vadd.f32 0.0, %v165
    %v167 = vpop.f32.mrb[0].mxu0
    %168 = vdwg.mxu0
    %v169 = vld [vmem:[#allocation7] sm:$0xff]
    %v170 = vld [vmem:[#allocation7 + $0x8] sm:$0xff]
    %v171 = vld [vmem:[#allocation7 + $0x10] sm:$0xff]
    %v172 = vld [vmem:[#allocation7 + $0x18] sm:$0xff]
    %v173 = vld [vmem:[#allocation7 + $0x20] sm:$0xff]
    %v174 = vld [vmem:[#allocation7 + $0x28] sm:$0xff]
    %v175 = vld [vmem:[#allocation7 + $0x30] sm:$0xff]
    %v176 = vld [vmem:[#allocation7 + $0x38] sm:$0xff]
    %v177 = vld [vmem:[#allocation7 + $0x40] sm:$0xff]
    %v178 = vld [vmem:[#allocation7 + $0x48] sm:$0xff]
    %v179 = vld [vmem:[#allocation7 + $0x50] sm:$0xff]
    %v180 = vld [vmem:[#allocation7 + $0x58] sm:$0xff]
    %v181 = vld [vmem:[#allocation7 + $0x60] sm:$0xff]
    %v182 = vld [vmem:[#allocation7 + $0x68] sm:$0xff]
    %v183 = vld [vmem:[#allocation7 + $0x70] sm:$0xff]
    %v184 = vld [vmem:[#allocation7 + $0x78] sm:$0xff]
    %185 = vmatprep.subr.mxu0 0.0
    %186 = vmatpush1.msra.mxu0 %v169
    %187 = vmatprep.subr.mxu0 0.0
    %188 = vmatpush1.msra.mxu0 %v170
    %189 = vmatprep.subr.mxu0 0.0
    %190 = vmatpush1.msra.mxu0 %v171
    %191 = vmatprep.subr.mxu0 0.0
    %192 = vmatpush1.msra.mxu0 %v172
    %193 = vmatprep.subr.mxu0 0.0
    %194 = vmatpush1.msra.mxu0 %v173
    %195 = vmatprep.subr.mxu0 0.0
    %196 = vmatpush1.msra.mxu0 %v174
    %197 = vmatprep.subr.mxu0 0.0
    %198 = vmatpush1.msra.mxu0 %v175
    %199 = vmatprep.subr.mxu0 0.0
    %200 = vmatpush1.msra.mxu0 %v176
    %201 = vmatprep.subr.mxu0 0.0
    %202 = vmatpush1.msra.mxu0 %v177
    %203 = vmatprep.subr.mxu0 0.0
    %204 = vmatpush1.msra.mxu0 %v178
    %205 = vmatprep.subr.mxu0 0.0
    %206 = vmatpush1.msra.mxu0 %v179
    %207 = vmatprep.subr.mxu0 0.0
    %208 = vmatpush1.msra.mxu0 %v180
    %209 = vmatprep.subr.mxu0 0.0
    %210 = vmatpush1.msra.mxu0 %v181
    %211 = vmatprep.subr.mxu0 0.0
    %212 = vmatpush1.msra.mxu0 %v182
    %213 = vmatprep.subr.mxu0 0.0
    %214 = vmatpush1.msra.mxu0 %v183
    %215 = vmatprep.subr.mxu0 0.0
    %216 = vmatpush1.msra.mxu0 %v184
    %217 = vmatprep.subr.mxu0 0.0
    %218 = vmatpush1.msra.mxu0 0.0
    %219 = vmatprep.subr.mxu0 0.0
    %220 = vmatpush1.msra.mxu0 0.0
    %221 = vmatprep.subr.mxu0 0.0
    %222 = vmatpush1.msra.mxu0 0.0
    %223 = vmatprep.subr.mxu0 0.0
    %224 = vmatpush1.msra.mxu0 0.0
    %225 = vmatprep.subr.mxu0 0.0
    %226 = vmatpush1.msra.mxu0 0.0
    %227 = vmatprep.subr.mxu0 0.0
    %228 = vmatpush1.msra.mxu0 0.0
    %229 = vmatprep.subr.mxu0 0.0
    %230 = vmatpush1.msra.mxu0 0.0
    %231 = vmatprep.subr.mxu0 0.0
    %232 = vmatpush1.msra.mxu0 0.0
    %233 = vmatprep.subr.mxu0 0.0
    %234 = vmatpush1.msra.mxu0 0.0
    %235 = vmatprep.subr.mxu0 0.0
    %236 = vmatpush1.msra.mxu0 0.0
    %237 = vmatprep.subr.mxu0 0.0
    %238 = vmatpush1.msra.mxu0 0.0
    %239 = vmatprep.subr.mxu0 0.0
    %240 = vmatpush1.msra.mxu0 0.0
    %241 = vmatprep.subr.mxu0 0.0
    %242 = vmatpush1.msra.mxu0 0.0
    %243 = vmatprep.subr.mxu0 0.0
    %244 = vmatpush1.msra.mxu0 0.0
    %245 = vmatprep.subr.mxu0 0.0
    %246 = vmatpush1.msra.mxu0 0.0
    %247 = vmatprep.subr.mxu0 0.0
    %248 = vmatpush1.msra.mxu0 0.0
    %249 = vmatprep.mubr.f32.mxu0 0.0
    %250 = vmatmul.mubr.f32.gmra.mrb[0].mxu0 %v76
    %v251 = vpop.f32.mrb[0].mxu0
    %v252 = vadd.f32 0.0, %v251
    %v253 = vpop.f32.mrb[0].mxu0
    %254 = vmatprep.mubr.f32.mxu0 0.0
    %255 = vmatmul.mubr.f32.gmra.mrb[0].mxu0 %v77
    %v256 = vpop.f32.mrb[0].mxu0
    %v257 = vadd.f32 0.0, %v256
    %v258 = vpop.f32.mrb[0].mxu0
    %259 = vdwg.mxu0
    %v260 = vmul.f32 %v252, 0.5
    %v261 = vmul.f32 %v257, 0.5
    %v262 = vmul.f32 %v252, 0.70710677
    %v263 = vmul.f32 %v257, 0.70710677
    %v264 = verf.f32.pop %v262
    %v265 = verf.f32.pop %v263
    %v266 = vadd.f32 %v264, 1.0
    %v267 = vadd.f32 %v265, 1.0
    %v268 = vmul.f32 %v260, %v266
    %v269 = vmul.f32 %v261, %v267
    %v270 = vmul.f32 %v161, %v268
    %v271 = vmul.f32 %v166, %v269
    %272 = vadd.xlane.f32.xlu0 %v270
    %v273 = vpop.xlane.xlu0 %272
    %274 = vadd.xlane.f32.xlu0 %v271
    %v275 = vpop.xlane.xlu0 %274
    %v276 = vmul.f32 %v270, %v270
    %v277 = vmul.f32 %v271, %v271
    %278 = vadd.xlane.f32.xlu0 %v276
    %v279 = vpop.xlane.xlu0 %278
    %280 = vadd.xlane.f32.xlu0 %v277
    %v281 = vpop.xlane.xlu0 %280
    %v282 = vmul.f32 %v273, 0.0078125
    %v283 = vmul.f32 %v275, 0.0078125
    %v284 = vmul.f32 %v279, 0.0078125
    %v285 = vmul.f32 %v281, 0.0078125
    %v286 = vmul.f32 %v282, %v282
    %v287 = vmul.f32 %v283, %v283
    %v288 = vsub.f32 %v284, %v286
    %v289 = vsub.f32 %v285, %v287
    %v290 = vsub.f32 %v270, %v282
    %v291 = vsub.f32 %v271, %v283
    %v292 = vadd.f32 %v288, 1e-05
    %v293 = vadd.f32 %v289, 1e-05
    %v294 = vrsqrt.pop %v292
    %v295 = vrsqrt.pop %v293
    %v296 = vmul.f32 %v290, %v294
    %v297 = vmul.f32 %v291, %v295
    %v298 = vld [vmem:[%s3] sm:$0x1]
    %v300 = vlaneseq
    %v301 = vshrl.u32 %v300, 7
    %v302 = vsub.s32 0, %v301
    %v303 = vrot.slane %v298, %v302
    %v305 = vmul.f32 %v296, %v303
    %v306 = vmul.f32 %v297, %v303
    %v307 = vld [vmem:[#allocation8] sm:$0xff]
    %v308 = vld [vmem:[#allocation8 + $0x8] sm:$0xff]
    %v309 = vld [vmem:[#allocation8 + $0x10] sm:$0xff]
    %v310 = vld [vmem:[#allocation8 + $0x18] sm:$0xff]
    %v311 = vld [vmem:[#allocation8 + $0x20] sm:$0xff]
    %v312 = vld [vmem:[#allocation8 + $0x28] sm:$0xff]
    %v313 = vld [vmem:[#allocation8 + $0x30] sm:$0xff]
    %v314 = vld [vmem:[#allocation8 + $0x38] sm:$0xff]
    %v315 = vld [vmem:[#allocation8 + $0x40] sm:$0xff]
    %v316 = vld [vmem:[#allocation8 + $0x48] sm:$0xff]
    %v317 = vld [vmem:[#allocation8 + $0x50] sm:$0xff]
    %v318 = vld [vmem:[#allocation8 + $0x58] sm:$0xff]
    %v319 = vld [vmem:[#allocation8 + $0x60] sm:$0xff]
    %v320 = vld [vmem:[#allocation8 + $0x68] sm:$0xff]
    %v321 = vld [vmem:[#allocation8 + $0x70] sm:$0xff]
    %v322 = vld [vmem:[#allocation8 + $0x78] sm:$0xff]
    %323 = vmatprep.subr.mxu0 0.0
    %324 = vmatpush1.msra.mxu0 %v307
    %325 = vmatprep.subr.mxu0 0.0
    %326 = vmatpush1.msra.mxu0 %v308
    %327 = vmatprep.subr.mxu0 0.0
    %328 = vmatpush1.msra.mxu0 %v309
    %329 = vmatprep.subr.mxu0 0.0
    %330 = vmatpush1.msra.mxu0 %v310
    %331 = vmatprep.subr.mxu0 0.0
    %332 = vmatpush1.msra.mxu0 %v311
    %333 = vmatprep.subr.mxu0 0.0
    %334 = vmatpush1.msra.mxu0 %v312
    %335 = vmatprep.subr.mxu0 0.0
    %336 = vmatpush1.msra.mxu0 %v313
    %337 = vmatprep.subr.mxu0 0.0
    %338 = vmatpush1.msra.mxu0 %v314
    %339 = vmatprep.subr.mxu0 0.0
    %340 = vmatpush1.msra.mxu0 %v315
    %341 = vmatprep.subr.mxu0 0.0
    %342 = vmatpush1.msra.mxu0 %v316
    %343 = vmatprep.subr.mxu0 0.0
    %344 = vmatpush1.msra.mxu0 %v317
    %345 = vmatprep.subr.mxu0 0.0
    %346 = vmatpush1.msra.mxu0 %v318
    %347 = vmatprep.subr.mxu0 0.0
    %348 = vmatpush1.msra.mxu0 %v319
    %349 = vmatprep.subr.mxu0 0.0
    %350 = vmatpush1.msra.mxu0 %v320
    %351 = vmatprep.subr.mxu0 0.0
    %352 = vmatpush1.msra.mxu0 %v321
    %353 = vmatprep.subr.mxu0 0.0
    %354 = vmatpush1.msra.mxu0 %v322
    %355 = vmatprep.subr.mxu0 0.0
    %356 = vmatpush1.msra.mxu0 0.0
    %357 = vmatprep.subr.mxu0 0.0
    %358 = vmatpush1.msra.mxu0 0.0
    %359 = vmatprep.subr.mxu0 0.0
    %360 = vmatpush1.msra.mxu0 0.0
    %361 = vmatprep.subr.mxu0 0.0
    %362 = vmatpush1.msra.mxu0 0.0
    %363 = vmatprep.subr.mxu0 0.0
    %364 = vmatpush1.msra.mxu0 0.0
    %365 = vmatprep.subr.mxu0 0.0
    %366 = vmatpush1.msra.mxu0 0.0
    %367 = vmatprep.subr.mxu0 0.0
    %368 = vmatpush1.msra.mxu0 0.0
    %369 = vmatprep.subr.mxu0 0.0
    %370 = vmatpush1.msra.mxu0 0.0
    %371 = vmatprep.subr.mxu0 0.0
    %372 = vmatpush1.msra.mxu0 0.0
    %373 = vmatprep.subr.mxu0 0.0
    %374 = vmatpush1.msra.mxu0 0.0
    %375 = vmatprep.subr.mxu0 0.0
    %376 = vmatpush1.msra.mxu0 0.0
    %377 = vmatprep.subr.mxu0 0.0
    %378 = vmatpush1.msra.mxu0 0.0
    %379 = vmatprep.subr.mxu0 0.0
    %380 = vmatpush1.msra.mxu0 0.0
    %381 = vmatprep.subr.mxu0 0.0
    %382 = vmatpush1.msra.mxu0 0.0
    %383 = vmatprep.subr.mxu0 0.0
    %384 = vmatpush1.msra.mxu0 0.0
    %385 = vmatprep.subr.mxu0 0.0
    %386 = vmatpush1.msra.mxu0 0.0
    %387 = vmatprep.mubr.f32.mxu0 0.0
    %388 = vmatmul.mubr.f32.gmra.mrb[0].mxu0 %v305
    %v389 = vpop.f32.mrb[0].mxu0
    %v390 = vadd.f32 0.0, %v389
    %v391 = vpop.f32.mrb[0].mxu0
    %392 = vmatprep.mubr.f32.mxu0 0.0
    %393 = vmatmul.mubr.f32.gmra.mrb[0].mxu0 %v306
    %v394 = vpop.f32.mrb[0].mxu0
    %v395 = vadd.f32 0.0, %v394
    %v396 = vpop.f32.mrb[0].mxu0
    %397 = vdwg.mxu0
    %398 = vst [vmem:[#allocation10] sm:$0xff] %v390
    %399 = vst [vmem:[#allocation10 + $0x8] sm:$0xff] %v395
    // Predicated region
    $region38: #{tpu_custom_call.1} parent=1 // pred_check
      _
    $region39: #{tpu_custom_call.1} parent=1 // pred_check_branch
      %401 = sbr.rel (0) target = $region41
    $region40: #{tpu_custom_call.1} parent=1 // pred_region
      %s403 = ssub.s32 256, 256
      %404 = vsyncadd [#allocation4], %s403
      %s405 = sshll.u32 [#allocation10], 4
      %s406 = int_to_ptr.vmem [resolvable:$true] %s405
      %411 = dma.vmem_to_hbm [thread:$0]  %s406, 256, %s5, [#allocation4], 128, 128, 8
    $region41: #{tpu_custom_call.1} parent=1 // pred_fallthru
      _
    // Predicated region
    $region42: #{tpu_custom_call.1} parent=1 // pred_check
      _
    $region43: #{tpu_custom_call.1} parent=1 // pred_check_branch
      %413 = sbr.rel (0) target = $region45
    $region44: #{tpu_custom_call.1} parent=1 // pred_region
      %414 = dma.done [#allocation4], 256
    $region45: #{tpu_custom_call.1} parent=1 // pred_fallthru
      _
    %415 = vsyncpa [#allocation3], 1
    %416 = vsyncpa [#allocation6], 1
    %417 = vsyncpa [#allocation9], 1
    %418 = vsyncpa [#allocation4], 1

</llo_original>
